<compile_context>
chip_gen: v5e
topology: v5e:2x2
jax: 0.10.0
libtpu: 0.0.40
codegen_flags: <defaults>
</compile_context>

<pallas_src>
import functools

import jax
import jax.numpy as jnp
from jax.experimental import pallas as pl
from jax.experimental.pallas import tpu as pltpu


def _soft_maximum_kernel(x_ref, o_ref, *, beta):
    # Block shape: (B_TILE, C, T_HW).  Do the softmax internals in float32 even
    # for bf16 I/O (v5e VPU/EUP have no bf16 path; also preserves accuracy).
    xf = x_ref[...].astype(jnp.float32)
    z = beta * xf
    # Numerically-stable softmax over the channel axis (axis=1 of the block).
    m = jnp.max(z, axis=1, keepdims=True)
    e = jnp.exp(z - m)
    s = jnp.sum(e, axis=1, keepdims=True)
    # One EUP reciprocal on the reduced (B_TILE, 1, T_HW) row instead of C
    # full-tensor divides; a single Newton step restores full f32 accuracy.
    inv = pl.reciprocal(s, approx=True)
    inv = inv * (2.0 - s * inv)
    o_ref[...] = (xf * e * inv).astype(o_ref.dtype)


def _choose_tiles(N, C, HW, elt_bytes, target_block_bytes=2 * 1024 * 1024):
    """Pick (b_tile, t_hw, hw_pad).

    t_hw is a multiple of 128 (lane-dense loads/stores, no masked vst.msk) sized
    so one block is ~target_block_bytes; with in+out double-buffering that keeps
    total VMEM use well under v7x's 64 MiB while large enough that the ~0.35 us
    per-grid-step overhead is amortized.  When the whole spatial extent fits in
    one tile, extra batch elements are fused into the block for the same reason.
    """
    hw128 = ((HW + 127) // 128) * 128
    max_lanes = max(128, (target_block_bytes // max(C * elt_bytes, 1)) // 128 * 128)
    t_hw = min(hw128, max_lanes)
    hw_pad = ((HW + t_hw - 1) // t_hw) * t_hw  # guarantees t_hw divides hw_pad
    b_tile = 1
    if t_hw == hw_pad:  # whole spatial extent in one tile: fuse batch elements
        per_batch = C * hw_pad * elt_bytes
        b_tile = max(1, min(N, target_block_bytes // max(per_batch, 1)))
        while N % b_tile != 0:  # keep the grid free of partial batch blocks
            b_tile -= 1
    return b_tile, t_hw, hw_pad


def soft_maximum(x, beta=1.0):
    """x: (N, C, H, W) array (NCHW, like the PyTorch module). Returns same shape."""
    N, C, H, W = x.shape
    HW = H * W
    elt_bytes = jnp.dtype(x.dtype).itemsize
    b_tile, t_hw, hw_pad = _choose_tiles(N, C, HW, elt_bytes)

    x2 = x.reshape(N, C, HW)
    if hw_pad != HW:
        # Pad the fused spatial axis so every block is lane-dense (multiple of
        # 128).  Padded lanes compute a harmless softmax of zeros, are gated by
        # x == 0 to exact zeros, and are sliced off below.
        x2 = jnp.pad(x2, ((0, 0), (0, 0), (0, hw_pad - HW)))

    # Note: for C < 8 (f32) the channel-on-sublane layout pads sublanes; since
    # the kernel is HBM-bandwidth bound we accept that padding knowingly.
    block_bytes = b_tile * C * t_hw * elt_bytes
    # in + out, double-buffered, plus headroom for f32 intermediates.  Raising
    # the scoped limit matters on v5e (16 MiB default); 56 MiB cap stays under
    # v7x's 64 MiB physical VMEM.
    vmem_limit = int(min(max(32 * 1024 * 1024, 8 * block_bytes), 56 * 1024 * 1024))

    kernel = functools.partial(_soft_maximum_kernel, beta=float(beta))

    out = pl.pallas_call(
        kernel,
        out_shape=jax.ShapeDtypeStruct((N, C, hw_pad), x.dtype),
        grid_spec=pltpu.PrefetchScalarGridSpec(
            num_scalar_prefetch=0,
            grid=(N // b_tile, hw_pad // t_hw),
            in_specs=[pl.BlockSpec((b_tile, C, t_hw), lambda n, h: (n, 0, h))],
            out_specs=pl.BlockSpec((b_tile, C, t_hw), lambda n, h: (n, 0, h)),
        ),
        compiler_params=pltpu.CompilerParams(
            # The softmax reduction lives entirely inside each block, so no grid
            # axis is a reduction: both axes are parallel (megacore-shardable).
            dimension_semantics=("parallel", "parallel"),
            vmem_limit_bytes=vmem_limit,
        ),
    )(x2)

    if hw_pad != HW:
        out = out[:, :, :HW]
    return out.reshape(N, C, H, W)


if __name__ == "__main__":
    key = jax.random.PRNGKey(0)
    N, C, H, W = 2, 4, 16, 16
    x = jax.random.normal(key, (N, C, H, W), dtype=jnp.float32)

    beta = 1.0
    y = soft_maximum(x, beta=beta)
    y = jax.block_until_ready(y)

    # Reference check in plain JAX (same semantics as the PyTorch module).
    ref = x * jax.nn.softmax(beta * x, axis=1)
    assert jnp.allclose(y, ref, atol=1e-5, rtol=1e-5), "mismatch vs reference"

    print("KERNEL_OK")
</pallas_src>

<mosaic_0001>
module attributes {stable_mosaic.version = 11 : i64} {
  func.func @_soft_maximum_kernel(%arg0: i32, %arg1: i32, %arg2: memref<2x4x256xf32, #tpu.memory_space<vmem>>, %arg3: memref<2x4x256xf32, #tpu.memory_space<vmem>>) attributes {dimension_semantics = [#tpu.dimension_semantics<parallel>, #tpu.dimension_semantics<parallel>], iteration_bounds = array<i64: 1, 1>, scalar_prefetch = 0 : i64, scratch_operands = 0 : i64, tpu.core_type = #tpu.core_type<tc>, window_params = [{transform_indices = @transform_0, window_bounds = array<i64: 2, 4, 256>}, {transform_indices = @transform_1, window_bounds = array<i64: 2, 4, 256>}]} {
    %c0 = arith.constant 0 : index
    %c0_0 = arith.constant 0 : index
    %c0_1 = arith.constant 0 : index
    %0 = vector.load %arg2[%c0, %c0_0, %c0_1] : memref<2x4x256xf32, #tpu.memory_space<vmem>>, vector<2x4x256xf32>
    %cst = arith.constant 1.000000e+00 : f32
    %1 = vector.broadcast %cst : f32 to vector<2x4x256xf32>
    %2 = arith.mulf %1, %0 : vector<2x4x256xf32>
    %cst_2 = arith.constant dense<0xFF800000> : vector<2x256xf32>
    %3 = vector.multi_reduction <maximumf>, %2, %cst_2 [1] : vector<2x4x256xf32> to vector<2x256xf32>
    %4 = vector.shape_cast %3 : vector<2x256xf32> to vector<2x1x256xf32>
    %5 = vector.broadcast %4 : vector<2x1x256xf32> to vector<2x4x256xf32>
    %6 = arith.subf %2, %5 : vector<2x4x256xf32>
    %7 = math.exp %6 : vector<2x4x256xf32>
    %cst_3 = arith.constant dense<0.000000e+00> : vector<2x256xf32>
    %8 = vector.multi_reduction <add>, %7, %cst_3 [1] : vector<2x4x256xf32> to vector<2x256xf32>
    %9 = vector.shape_cast %8 : vector<2x256xf32> to vector<2x1x256xf32>
    %10 = tpu.reciprocal %9 {approx = true} : vector<2x1x256xf32> -> vector<2x1x256xf32>
    %11 = arith.mulf %9, %10 : vector<2x1x256xf32>
    %cst_4 = arith.constant 2.000000e+00 : f32
    %12 = vector.broadcast %cst_4 : f32 to vector<2x1x256xf32>
    %13 = arith.subf %12, %11 : vector<2x1x256xf32>
    %14 = arith.mulf %10, %13 : vector<2x1x256xf32>
    %15 = arith.mulf %0, %7 : vector<2x4x256xf32>
    %16 = vector.broadcast %14 : vector<2x1x256xf32> to vector<2x4x256xf32>
    %17 = arith.mulf %15, %16 : vector<2x4x256xf32>
    %c0_5 = arith.constant 0 : index
    %c0_6 = arith.constant 0 : index
    %c0_7 = arith.constant 0 : index
    %18 = vector.load %arg3[%c0_5, %c0_6, %c0_7] : memref<2x4x256xf32, #tpu.memory_space<vmem>>, vector<2x4x256xf32>
    tpu.vector_store %arg3[%c0_5, %c0_6, %c0_7], %17 {strides = array<i32>} : memref<2x4x256xf32, #tpu.memory_space<vmem>>, vector<2x4x256xf32>,
    return
  }
  func.func @transform_0(%arg0: i32, %arg1: i32) -> (i32, i32, i32) {
    %c0_i32 = arith.constant 0 : i32
    %c0_i32_0 = arith.constant 0 : i32
    return %arg0, %c0_i32, %arg1 : i32, i32, i32
  }
  func.func @transform_1(%arg0: i32, %arg1: i32) -> (i32, i32, i32) {
    %c0_i32 = arith.constant 0 : i32
    %c0_i32_0 = arith.constant 0 : i32
    return %arg0, %c0_i32, %arg1 : i32, i32, i32
  }
}

</mosaic_0001>

<llo_original>
// kernel: tpu_custom_call.1
$region0: #{tpu_custom_call.1}
  #allocation0 [shape = 'u32[]', space=smem, size = 0x4, offset = 0x4, fixed_abs, tag = 'smem constant byte address 0x4 - core index']
  #allocation1 [shape = 'u32[72,128]{1,0:T(1,128)}', space=vmem, size = 0x9000, scoped, tag = 'internal scratch']
  %s0 = inlined_call_operand.hbm [shape: f32[2,4,256], index: 0, kind: input, shape index: {}]
  %s1 = inlined_call_operand.hbm [shape: f32[2,4,256], index: 1, kind: output, shape index: {}]
  %s2 = sld [smem:[#allocation0]]
  $region18: #{tpu_custom_call.1} parent=0
    _
  %s4 = ssub.s32 1, %s2
  %s5 = scalar_select 0, %s4, %s2
  $region1: #{tpu_custom_call.1} parent=0
    #allocation2 [shape = 'u8[8192]{0}', space=vmem, size = 0x2000, scoped, tag = 'input window, operand 0, single buffered']
    #allocation3 [shape = 's32[1]{0}', space=sflag, size = 0x4, scoped, tag = 'scoped memory for tpu_custom_call.1']
    #allocation4 [shape = 's32[1]{0}', space=sflag, size = 0x4, scoped, tag = 'scoped memory for tpu_custom_call.1']
    #allocation5 [shape = 'u8[8192]{0}', space=vmem, size = 0x2000, scoped, tag = 'output window, operand 0, single buffered']
    %6 = vsyncpa [#allocation3], 0
    %7 = vsyncpa [#allocation4], 0
    // Predicated region
    $region2: #{tpu_custom_call.1} parent=1 // pred_check
      _
    $region3: #{tpu_custom_call.1} parent=1 // pred_check_branch
      %9 = sbr.rel (0) target = $region5
    $region4: #{tpu_custom_call.1} parent=1 // pred_region
      %11 = vsyncadd [#allocation3], 0
      %s12 = sshll.u32 %s0, 4
      %s13 = int_to_ptr.hbm [resolvable:$true] %s12
      %s14 = sshll.u32 [#allocation2], 4
      %s15 = int_to_ptr.vmem [resolvable:$true] %s14
      %20 = dma.hbm_to_vmem [thread:$0]  %s13, 256, %s15, [#allocation3], 128, 128, 8
    $region5: #{tpu_custom_call.1} parent=1 // pred_fallthru
      _
    // Predicated region
    $region6: #{tpu_custom_call.1} parent=1 // pred_check
      _
    $region7: #{tpu_custom_call.1} parent=1 // pred_check_branch
      %22 = sbr.rel (0) target = $region9
    $region8: #{tpu_custom_call.1} parent=1 // pred_region
      %24 = dma.done [#allocation3], 256
    $region9: #{tpu_custom_call.1} parent=1 // pred_fallthru
      _
    %v25 = vld [vmem:[#allocation2] sm:$0xff]
    %v26 = vld [vmem:[#allocation2 + $0x8] sm:$0xff]
    %29 = vst [vmem:[#allocation1] ss:$2 sm:$0xff] %v25
    %v30 = vld.sshfl [vmem:[#allocation1] sm:$0xff pattern:$0x75316420]
    %v31 = vld.sshfl [vmem:[#allocation1 + $0x8] sm:$0xff pattern:$0x75316420]
    %s32 = scalar_lea.vmem [#allocation1], 16
    %33 = vst [vmem:[%s32] ss:$2 sm:$0xff] %v26
    %v34 = vld.sshfl [vmem:[#allocation1 + $0x10] sm:$0xff pattern:$0x75316420]
    %v35 = vld.sshfl [vmem:[#allocation1 + $0x18] sm:$0xff pattern:$0x75316420]
    %vm40 = vcmask 1043456
    %v41 = vsel %vm40, %v30, -inf
    %v42 = vrot.slane %v41, 4
    %v43 = vmax.f32 %v41, %v42
    %v44 = vrot.slane %v43, 2
    %v45 = vmax.f32 %v43, %v44
    %v46 = vrot.slane %v45, 1
    %v47 = vmax.f32 %v45, %v46
    %v48 = vsel %vm40, %v31, -inf
    %v49 = vrot.slane %v48, 4
    %v50 = vmax.f32 %v48, %v49
    %v51 = vrot.slane %v50, 2
    %v52 = vmax.f32 %v50, %v51
    %v53 = vrot.slane %v52, 1
    %v54 = vmax.f32 %v52, %v53
    %v55 = vsel %vm40, %v34, -inf
    %v56 = vrot.slane %v55, 4
    %v57 = vmax.f32 %v55, %v56
    %v58 = vrot.slane %v57, 2
    %v59 = vmax.f32 %v57, %v58
    %v60 = vrot.slane %v59, 1
    %v61 = vmax.f32 %v59, %v60
    %v62 = vsel %vm40, %v35, -inf
    %v63 = vrot.slane %v62, 4
    %v64 = vmax.f32 %v62, %v63
    %v65 = vrot.slane %v64, 2
    %v66 = vmax.f32 %v64, %v65
    %v67 = vrot.slane %v66, 1
    %v68 = vmax.f32 %v66, %v67
    %v73 = vrot.slane %v54, 4
    %v74 = vrot.slane %v68, 4
    %v75 = vsel %vm40, %v47, %v73
    %v76 = vsel %vm40, %v61, %v74
    %v79 = vsub.f32 %v25, %v75
    %v80 = vsub.f32 %v26, %v76
    %v81 = vmul.f32 %v79, 1.442695
    %v82 = vpow.pop %v81
    %v83 = vmul.f32 %v80, 1.442695
    %v84 = vpow.pop %v83
    %87 = vst [vmem:[#allocation1] ss:$2 sm:$0xff] %v82
    %v88 = vld.sshfl [vmem:[#allocation1] sm:$0xff pattern:$0x75316420]
    %v89 = vld.sshfl [vmem:[#allocation1 + $0x8] sm:$0xff pattern:$0x75316420]
    %s90 = scalar_lea.vmem [#allocation1], 16
    %91 = vst [vmem:[%s90] ss:$2 sm:$0xff] %v84
    %v92 = vld.sshfl [vmem:[#allocation1 + $0x10] sm:$0xff pattern:$0x75316420]
    %v93 = vld.sshfl [vmem:[#allocation1 + $0x18] sm:$0xff pattern:$0x75316420]
    %v98 = vsel %vm40, %v88, 0.0
    %v99 = vrot.slane %v98, 4
    %v100 = vadd.f32 %v98, %v99
    %v101 = vrot.slane %v100, 2
    %v102 = vadd.f32 %v100, %v101
    %v103 = vrot.slane %v102, 1
    %v104 = vadd.f32 %v102, %v103
    %v105 = vsel %vm40, %v89, 0.0
    %v106 = vrot.slane %v105, 4
    %v107 = vadd.f32 %v105, %v106
    %v108 = vrot.slane %v107, 2
    %v109 = vadd.f32 %v107, %v108
    %v110 = vrot.slane %v109, 1
    %v111 = vadd.f32 %v109, %v110
    %v112 = vsel %vm40, %v92, 0.0
    %v113 = vrot.slane %v112, 4
    %v114 = vadd.f32 %v112, %v113
    %v115 = vrot.slane %v114, 2
    %v116 = vadd.f32 %v114, %v115
    %v117 = vrot.slane %v116, 1
    %v118 = vadd.f32 %v116, %v117
    %v119 = vsel %vm40, %v93, 0.0
    %v120 = vrot.slane %v119, 4
    %v121 = vadd.f32 %v119, %v120
    %v122 = vrot.slane %v121, 2
    %v123 = vadd.f32 %v121, %v122
    %v124 = vrot.slane %v123, 1
    %v125 = vadd.f32 %v123, %v124
    %v126 = vrcp.pop %v104
    %v127 = vrcp.pop %v111
    %v128 = vrcp.pop %v118
    %v129 = vrcp.pop %v125
    %v130 = vmul.f32 %v104, %v126
    %v131 = vmul.f32 %v111, %v127
    %v132 = vmul.f32 %v118, %v128
    %v133 = vmul.f32 %v125, %v129
    %v134 = vsub.f32 2.0, %v130
    %v135 = vsub.f32 2.0, %v131
    %v136 = vsub.f32 2.0, %v132
    %v137 = vsub.f32 2.0, %v133
    %v138 = vmul.f32 %v126, %v134
    %v139 = vmul.f32 %v127, %v135
    %v140 = vmul.f32 %v128, %v136
    %v141 = vmul.f32 %v129, %v137
    %v142 = vmul.f32 %v25, %v82
    %v143 = vmul.f32 %v26, %v84
    %v148 = vrot.slane %v139, 4
    %v149 = vrot.slane %v141, 4
    %v150 = vsel %vm40, %v138, %v148
    %v151 = vsel %vm40, %v140, %v149
    %v154 = vmul.f32 %v142, %v150
    %v155 = vmul.f32 %v143, %v151
    %156 = vst [vmem:[#allocation5] sm:$0xff] %v154
    %157 = vst [vmem:[#allocation5 + $0x8] sm:$0xff] %v155
    // Predicated region
    $region10: #{tpu_custom_call.1} parent=1 // pred_check
      _
    $region11: #{tpu_custom_call.1} parent=1 // pred_check_branch
      %159 = sbr.rel (0) target = $region13
    $region12: #{tpu_custom_call.1} parent=1 // pred_region
      %161 = vsyncadd [#allocation4], 0
      %s162 = sshll.u32 [#allocation5], 4
      %s163 = int_to_ptr.vmem [resolvable:$true] %s162
      %s164 = sshll.u32 %s1, 4
      %s165 = int_to_ptr.hbm [resolvable:$true] %s164
      %170 = dma.vmem_to_hbm [thread:$0]  %s163, 256, %s165, [#allocation4], 128, 128, 8
    $region13: #{tpu_custom_call.1} parent=1 // pred_fallthru
      _
    // Predicated region
    $region14: #{tpu_custom_call.1} parent=1 // pred_check
      _
    $region15: #{tpu_custom_call.1} parent=1 // pred_check_branch
      %172 = sbr.rel (0) target = $region17
    $region16: #{tpu_custom_call.1} parent=1 // pred_region
      %174 = dma.done [#allocation4], 256
    $region17: #{tpu_custom_call.1} parent=1 // pred_fallthru
      _
    %175 = vsyncpa [#allocation3], 1
    %176 = vsyncpa [#allocation4], 1

</llo_original>
